<compile_context>
chip_gen: v7x
topology: tpu7x:2x2x1
jax: 0.10.0
libtpu: 0.0.40
codegen_flags: <defaults>
</compile_context>

<pallas_src>
import functools

import jax
import jax.numpy as jnp
from jax.experimental import pallas as pl
from jax.experimental.pallas import tpu as pltpu

LEAKY_SLOPE = 0.01
BN_EPS = 1e-5
LANE = 128


def _round_up(x, m):
    return (x + m - 1) // m * m


def _tpu_config():
    """Generation-specific knobs: fused-path row cap, VMEM budget, TC count."""
    kind = ""
    try:
        kind = jax.devices()[0].device_kind.lower()
    except Exception:
        pass
    if "v7" in kind:
        # 64 MiB VMEM per TC, 2 TCs: small fused cap so the two-TC tiled path
        # takes over early; leave VMEM headroom.
        return {"fused_max": 2048, "vmem": 48 * 1024 * 1024, "cores": 2}
    if "v6" in kind or "v5e" in kind or "v5 lite" in kind or "trillium" in kind:
        # 128 MiB VMEM, 1 TC: a single fused launch is best far beyond 512 rows.
        return {"fused_max": 8192, "vmem": 96 * 1024 * 1024, "cores": 1}
    # Unknown generation: conservative VMEM budget, assume a 2-core megacore.
    return {"fused_max": 2048, "vmem": 32 * 1024 * 1024, "cores": 2}


def _leaky_relu(x):
    return jnp.where(x > 0, x, LEAKY_SLOPE * x)


def _mlp(x_ref, w1_ref, b1_ref, w2_ref, b2_ref):
    """leaky(leaky(x @ W1 + b1) @ W2 + b2); bf16 MXU inputs, f32 accumulate."""
    x = x_ref[...].astype(jnp.bfloat16)
    h1 = jnp.dot(x, w1_ref[...], preferred_element_type=jnp.float32) + b1_ref[...]
    h1 = _leaky_relu(h1)
    h2 = jnp.dot(h1.astype(jnp.bfloat16), w2_ref[...],
                 preferred_element_type=jnp.float32) + b2_ref[...]
    return _leaky_relu(h2)


# ---------------------------------------------------------------------------
# Fused kernel: whole (small/medium) batch resident, full-batch BN in one pass.
# ---------------------------------------------------------------------------
def _fused_kernel(x_ref, w1_ref, b1_ref, w2_ref, b2_ref, gamma_ref, beta_ref,
                  o_ref, *, apply_bn: bool, batch: int, out_dim: int):
    h2 = _mlp(x_ref, w1_ref, b1_ref, w2_ref, b2_ref)
    if apply_bn:
        inv_n = 1.0 / batch
        mean = jnp.sum(h2, axis=0, keepdims=True) * inv_n
        var = jnp.maximum(jnp.sum(h2 * h2, axis=0, keepdims=True) * inv_n
                          - mean * mean, 0.0)
        scale = gamma_ref[...] * jax.lax.rsqrt(var + BN_EPS)   # EUP rsqrt
        h2 = (h2 - mean) * scale + beta_ref[...]
    o_ref[...] = h2[:, :out_dim].astype(o_ref.dtype)           # true-width store


# ---------------------------------------------------------------------------
# Tiled pass 1: per-tile MLP -> per-tile sum / sum-of-squares only (no h2 out).
# ---------------------------------------------------------------------------
def _stats_kernel(x_ref, w1_ref, b1_ref, w2_ref, b2_ref, stats_ref,
                  *, batch: int, tile: int):
    h2 = _mlp(x_ref, w1_ref, b1_ref, w2_ref, b2_ref)
    # Mask rows of the (possibly partial) last tile out of the batch stats.
    row = (jax.lax.broadcasted_iota(jnp.int32, (tile, 1), 0)
           + pl.program_id(0) * tile)
    h2m = jnp.where(row < batch, h2, 0.0)
    stats_ref[0, 0:1, :] = jnp.sum(h2m, axis=0, keepdims=True)
    stats_ref[0, 1:2, :] = jnp.sum(h2m * h2m, axis=0, keepdims=True)


# ---------------------------------------------------------------------------
# Tiled pass 2: recompute MLP from x, reduce stats in-kernel, apply BN affine,
# store the output at its true width D.
# ---------------------------------------------------------------------------
def _bn_apply_kernel(stats_ref, x_ref, w1_ref, b1_ref, w2_ref, b2_ref,
                     gamma_ref, beta_ref, o_ref, *, batch: int, out_dim: int):
    h2 = _mlp(x_ref, w1_ref, b1_ref, w2_ref, b2_ref)
    s = jnp.sum(stats_ref[...], axis=0)            # (2, Dp) cross-tile reduce
    inv_n = 1.0 / batch
    mean = s[0:1, :] * inv_n
    var = jnp.maximum(s[1:2, :] * inv_n - mean * mean, 0.0)
    scale = gamma_ref[...] * jax.lax.rsqrt(var + BN_EPS)
    shift = beta_ref[...] - mean * scale
    o_ref[...] = (h2 * scale + shift)[:, :out_dim].astype(o_ref.dtype)


def attribute_filter(ents_emb, params, *, max_fused_rows=None, max_tile_rows=4096):
    """Forward pass of AttributeFilter.

    ents_emb: [B, D] float32
    params: dict produced by init_params (lane-padded weights, bf16 W1/W2).
    Returns [B, D] float32.
    """
    B, D = ents_emb.shape
    Hp = params["w1"].shape[1]   # padded hidden dim (2D -> multiple of 128)
    Dp = params["w2"].shape[1]   # padded output dim (D  -> multiple of 128)
    cfg = _tpu_config()
    fused_max = cfg["fused_max"] if max_fused_rows is None else max_fused_rows
    vmem = cfg["vmem"]
    cores = cfg["cores"]
    apply_bn = B > 1             # static, mirrors `if len(h2) > 1`

    mlp_flops = 2 * B * D * Hp + 2 * B * Hp * Dp
    w_bytes = 2 * D * Hp + 2 * Hp * Dp + 4 * Hp + 12 * Dp

    # ---------------- small/medium batch: single fused launch ----------------
    if B <= fused_max or B <= 1:
        kernel = functools.partial(_fused_kernel, apply_bn=apply_bn,
                                   batch=B, out_dim=D)
        full = lambda shape: pl.BlockSpec(shape, lambda: (0,) * len(shape))
        return pl.pallas_call(
            kernel,
            out_shape=jax.ShapeDtypeStruct((B, D), jnp.float32),
            grid=(),
            in_specs=[
                full((B, D)),      # x (lane width D, unpadded)
                full((D, Hp)),     # W1 (bf16)
                full((1, Hp)),     # b1
                full((Hp, Dp)),    # W2 (bf16)
                full((1, Dp)),     # b2
                full((1, Dp)),     # gamma
                full((1, Dp)),     # beta
            ],
            out_specs=full((B, D)),
            compiler_params=pltpu.CompilerParams(vmem_limit_bytes=vmem),
            cost_estimate=pl.CostEstimate(
                flops=mlp_flops + 10 * B * Dp,
                transcendentals=Dp if apply_bn else 0,
                bytes_accessed=4 * B * D + w_bytes + 4 * B * D),
        )(ents_emb, params["w1"], params["b1"], params["w2"], params["b2"],
          params["gamma"], params["beta"])

    # ------------- large batch: two-pass, batch-tiled, recompute -------------
    # Pick tiles so nt is a multiple of the TensorCore count (even megacore
    # split on v7x) and each tile is large (amortize ~0.35 us per grid step).
    nt = max(cores, pl.cdiv(B, max_tile_rows))
    nt = _round_up(nt, cores)
    tb = _round_up(pl.cdiv(B, nt), 8)
    nt = pl.cdiv(B, tb)

    const = lambda shape: pl.BlockSpec(shape, lambda i: (0,) * len(shape))

    # Pass 1: per-tile sum / sum-of-squares partials only (tiny HBM output).
    stats = pl.pallas_call(
        functools.partial(_stats_kernel, batch=B, tile=tb),
        out_shape=jax.ShapeDtypeStruct((nt, 2, Dp), jnp.float32),
        grid=(nt,),
        in_specs=[
            pl.BlockSpec((tb, D), lambda i: (i, 0)),   # x tile
            const((D, Hp)),                            # W1 resident
            const((1, Hp)),                            # b1
            const((Hp, Dp)),                           # W2 resident
            const((1, Dp)),                            # b2
        ],
        out_specs=pl.BlockSpec((1, 2, Dp), lambda i: (i, 0, 0)),
        compiler_params=pltpu.CompilerParams(
            dimension_semantics=("parallel",), vmem_limit_bytes=vmem),
        cost_estimate=pl.CostEstimate(
            flops=mlp_flops + 4 * B * Dp,
            transcendentals=0,
            bytes_accessed=4 * B * D + w_bytes + 8 * nt * Dp),
    )(ents_emb, params["w1"], params["b1"], params["w2"], params["b2"])

    # Pass 2: recompute MLP per tile, reduce stats in-kernel, apply BN, store
    # the output at its true width D (no padded slab, no external slice).
    out = pl.pallas_call(
        functools.partial(_bn_apply_kernel, batch=B, out_dim=D),
        out_shape=jax.ShapeDtypeStruct((B, D), jnp.float32),
        grid=(nt,),
        in_specs=[
            const((nt, 2, Dp)),                        # stats, resident (tiny)
            pl.BlockSpec((tb, D), lambda i: (i, 0)),   # x tile (recompute)
            const((D, Hp)),                            # W1 resident
            const((1, Hp)),                            # b1
            const((Hp, Dp)),                           # W2 resident
            const((1, Dp)),                            # b2
            const((1, Dp)),                            # gamma
            const((1, Dp)),                            # beta
        ],
        out_specs=pl.BlockSpec((tb, D), lambda i: (i, 0)),
        compiler_params=pltpu.CompilerParams(
            dimension_semantics=("parallel",), vmem_limit_bytes=vmem),
        cost_estimate=pl.CostEstimate(
            flops=mlp_flops + 6 * B * Dp,
            transcendentals=Dp,
            bytes_accessed=4 * B * D + w_bytes + 8 * nt * Dp + 4 * B * D),
    )(stats, ents_emb, params["w1"], params["b1"], params["w2"], params["b2"],
      params["gamma"], params["beta"])
    return out


def init_params(key, embed_dim):
    """nn.Linear-style uniform init, lane-padded; W1/W2 stored as bf16 [in, out]."""
    D = int(embed_dim)
    H = 2 * D
    Dp = _round_up(D, LANE)
    Hp = _round_up(H, LANE)
    k1, k2, k3, k4 = jax.random.split(key, 4)
    bound1 = 1.0 / (D ** 0.5)
    bound2 = 1.0 / (H ** 0.5)

    def pad_to(a, shape):
        out = jnp.zeros(shape, a.dtype)
        return out.at[:a.shape[0], :a.shape[1]].set(a)

    w1 = jax.random.uniform(k1, (D, H), jnp.float32, -bound1, bound1)
    b1 = jax.random.uniform(k2, (1, H), jnp.float32, -bound1, bound1)
    w2 = jax.random.uniform(k3, (H, D), jnp.float32, -bound2, bound2)
    b2 = jax.random.uniform(k4, (1, D), jnp.float32, -bound2, bound2)
    return {
        "w1": pad_to(w1, (D, Hp)).astype(jnp.bfloat16),
        "b1": pad_to(b1, (1, Hp)),
        "w2": pad_to(w2, (Hp, Dp)).astype(jnp.bfloat16),
        "b2": pad_to(b2, (1, Dp)),
        "gamma": pad_to(jnp.ones((1, D), jnp.float32), (1, Dp)),
        "beta": jnp.zeros((1, Dp), jnp.float32),
    }


def reference(ents_emb, params, embed_dim):
    """Pure-JAX reference using the same bf16-matmul / f32-accumulate math."""
    D = int(embed_dim)
    h1 = jnp.dot(ents_emb.astype(jnp.bfloat16), params["w1"],
                 preferred_element_type=jnp.float32) + params["b1"]
    h1 = jnp.where(h1 > 0, h1, LEAKY_SLOPE * h1)
    h2 = jnp.dot(h1.astype(jnp.bfloat16), params["w2"],
                 preferred_element_type=jnp.float32) + params["b2"]
    h2 = jnp.where(h2 > 0, h2, LEAKY_SLOPE * h2)
    if ents_emb.shape[0] > 1:
        mean = h2.mean(0, keepdims=True)
        var = ((h2 - mean) ** 2).mean(0, keepdims=True)
        h2 = (h2 - mean) * jax.lax.rsqrt(var + BN_EPS) * params["gamma"] + params["beta"]
    return h2[:, :D]


if __name__ == "__main__":
    embed_dim = 32

    key = jax.random.PRNGKey(0)
    k_params, k_x1, k_x2 = jax.random.split(key, 3)
    params = init_params(k_params, embed_dim)

    # Small batch: single fused-kernel path (true-width output).
    x_small = jax.random.normal(k_x1, (8, embed_dim), jnp.float32)
    out_small = jax.block_until_ready(attribute_filter(x_small, params))
    ref_small = reference(x_small, params, embed_dim)
    assert out_small.shape == (8, embed_dim)
    assert jnp.allclose(out_small, ref_small, atol=1e-3, rtol=1e-3), \
        "fused path mismatch vs reference"

    # Larger batch: force the tiled two-pass (stats + recompute) path,
    # including a partial last tile, regardless of the detected TPU generation.
    x_big = jax.random.normal(k_x2, (1300, embed_dim), jnp.float32)
    out_big = jax.block_until_ready(
        attribute_filter(x_big, params, max_fused_rows=256, max_tile_rows=512))
    ref_big = reference(x_big, params, embed_dim)
    assert out_big.shape == (1300, embed_dim)
    assert jnp.allclose(out_big, ref_big, atol=1e-3, rtol=1e-3), \
        "tiled path mismatch vs reference"

    print("KERNEL_OK")
</pallas_src>

<mosaic_0001>
module attributes {stable_mosaic.version = 11 : i64} {
  func.func @_fused_kernel(%arg0: memref<8x32xf32, #tpu.memory_space<vmem>>, %arg1: memref<32x128xbf16, #tpu.memory_space<vmem>>, %arg2: memref<1x128xf32, #tpu.memory_space<vmem>>, %arg3: memref<128x128xbf16, #tpu.memory_space<vmem>>, %arg4: memref<1x128xf32, #tpu.memory_space<vmem>>, %arg5: memref<1x128xf32, #tpu.memory_space<vmem>>, %arg6: memref<1x128xf32, #tpu.memory_space<vmem>>, %arg7: memref<8x32xf32, #tpu.memory_space<vmem>>) attributes {dimension_semantics = [], scalar_prefetch = 0 : i64, scratch_operands = 0 : i64, tpu.core_type = #tpu.core_type<tc>} {
    %c0 = arith.constant 0 : index
    %c0_0 = arith.constant 0 : index
    %0 = vector.load %arg0[%c0, %c0_0] : memref<8x32xf32, #tpu.memory_space<vmem>>, vector<8x32xf32>
    %1 = arith.truncf %0 : vector<8x32xf32> to vector<8x32xbf16>
    %c0_1 = arith.constant 0 : index
    %c0_2 = arith.constant 0 : index
    %2 = vector.load %arg1[%c0_1, %c0_2] : memref<32x128xbf16, #tpu.memory_space<vmem>>, vector<32x128xbf16>
    %cst = arith.constant dense<0.000000e+00> : vector<8x128xf32>
    %3 = tpu.matmul %1, %2, %cst {dimension_numbers = #tpu.dot_dimension_numbers<[1], [0], [0], [1], [0, 0, 1, 1], [], []>} : vector<8x32xbf16>, vector<32x128xbf16>, vector<8x128xf32> -> vector<8x128xf32>
    %c0_3 = arith.constant 0 : index
    %c0_4 = arith.constant 0 : index
    %4 = vector.load %arg2[%c0_3, %c0_4] : memref<1x128xf32, #tpu.memory_space<vmem>>, vector<1x128xf32>
    %5 = vector.broadcast %4 : vector<1x128xf32> to vector<8x128xf32>
    %6 = arith.addf %3, %5 : vector<8x128xf32>
    %cst_5 = arith.constant 0.000000e+00 : f32
    %7 = vector.broadcast %cst_5 : f32 to vector<8x128xf32>
    %8 = arith.cmpf ogt, %6, %7 : vector<8x128xf32>
    %cst_6 = arith.constant 0.00999999977 : f32
    %9 = vector.broadcast %cst_6 : f32 to vector<8x128xf32>
    %10 = arith.mulf %9, %6 : vector<8x128xf32>
    %11 = arith.select %8, %6, %10 : vector<8x128xi1>, vector<8x128xf32>
    %12 = arith.truncf %11 : vector<8x128xf32> to vector<8x128xbf16>
    %c0_7 = arith.constant 0 : index
    %c0_8 = arith.constant 0 : index
    %13 = vector.load %arg3[%c0_7, %c0_8] : memref<128x128xbf16, #tpu.memory_space<vmem>>, vector<128x128xbf16>
    %cst_9 = arith.constant dense<0.000000e+00> : vector<8x128xf32>
    %14 = tpu.matmul %12, %13, %cst_9 {dimension_numbers = #tpu.dot_dimension_numbers<[1], [0], [0], [1], [0, 0, 1, 1], [], []>} : vector<8x128xbf16>, vector<128x128xbf16>, vector<8x128xf32> -> vector<8x128xf32>
    %c0_10 = arith.constant 0 : index
    %c0_11 = arith.constant 0 : index
    %15 = vector.load %arg4[%c0_10, %c0_11] : memref<1x128xf32, #tpu.memory_space<vmem>>, vector<1x128xf32>
    %16 = vector.broadcast %15 : vector<1x128xf32> to vector<8x128xf32>
    %17 = arith.addf %14, %16 : vector<8x128xf32>
    %cst_12 = arith.constant 0.000000e+00 : f32
    %18 = vector.broadcast %cst_12 : f32 to vector<8x128xf32>
    %19 = arith.cmpf ogt, %17, %18 : vector<8x128xf32>
    %cst_13 = arith.constant 0.00999999977 : f32
    %20 = vector.broadcast %cst_13 : f32 to vector<8x128xf32>
    %21 = arith.mulf %20, %17 : vector<8x128xf32>
    %22 = arith.select %19, %17, %21 : vector<8x128xi1>, vector<8x128xf32>
    %cst_14 = arith.constant dense<0.000000e+00> : vector<128xf32>
    %23 = vector.multi_reduction <add>, %22, %cst_14 [0] : vector<8x128xf32> to vector<128xf32>
    %24 = vector.shape_cast %23 : vector<128xf32> to vector<1x128xf32>
    %cst_15 = arith.constant 1.250000e-01 : f32
    %25 = vector.broadcast %cst_15 : f32 to vector<1x128xf32>
    %26 = arith.mulf %24, %25 : vector<1x128xf32>
    %27 = arith.mulf %22, %22 : vector<8x128xf32>
    %cst_16 = arith.constant dense<0.000000e+00> : vector<128xf32>
    %28 = vector.multi_reduction <add>, %27, %cst_16 [0] : vector<8x128xf32> to vector<128xf32>
    %29 = vector.shape_cast %28 : vector<128xf32> to vector<1x128xf32>
    %cst_17 = arith.constant 1.250000e-01 : f32
    %30 = vector.broadcast %cst_17 : f32 to vector<1x128xf32>
    %31 = arith.mulf %29, %30 : vector<1x128xf32>
    %32 = arith.mulf %26, %26 : vector<1x128xf32>
    %33 = arith.subf %31, %32 : vector<1x128xf32>
    %cst_18 = arith.constant 0.000000e+00 : f32
    %34 = vector.broadcast %cst_18 : f32 to vector<1x128xf32>
    %35 = arith.maximumf %33, %34 : vector<1x128xf32>
    %c0_19 = arith.constant 0 : index
    %c0_20 = arith.constant 0 : index
    %36 = vector.load %arg5[%c0_19, %c0_20] : memref<1x128xf32, #tpu.memory_space<vmem>>, vector<1x128xf32>
    %cst_21 = arith.constant 9.99999974E-6 : f32
    %37 = vector.broadcast %cst_21 : f32 to vector<1x128xf32>
    %38 = arith.addf %35, %37 : vector<1x128xf32>
    %39 = math.rsqrt %38 : vector<1x128xf32>
    %40 = arith.mulf %36, %39 : vector<1x128xf32>
    %41 = vector.broadcast %26 : vector<1x128xf32> to vector<8x128xf32>
    %42 = arith.subf %22, %41 : vector<8x128xf32>
    %43 = vector.broadcast %40 : vector<1x128xf32> to vector<8x128xf32>
    %44 = arith.mulf %42, %43 : vector<8x128xf32>
    %c0_22 = arith.constant 0 : index
    %c0_23 = arith.constant 0 : index
    %45 = vector.load %arg6[%c0_22, %c0_23] : memref<1x128xf32, #tpu.memory_space<vmem>>, vector<1x128xf32>
    %46 = vector.broadcast %45 : vector<1x128xf32> to vector<8x128xf32>
    %47 = arith.addf %44, %46 : vector<8x128xf32>
    %48 = vector.extract_strided_slice %47 {offsets = [0, 0], sizes = [8, 32], strides = [1, 1]} : vector<8x128xf32> to vector<8x32xf32>
    %c0_24 = arith.constant 0 : index
    %c0_25 = arith.constant 0 : index
    %49 = vector.load %arg7[%c0_24, %c0_25] : memref<8x32xf32, #tpu.memory_space<vmem>>, vector<8x32xf32>
    tpu.vector_store %arg7[%c0_24, %c0_25], %48 {strides = array<i32>} : memref<8x32xf32, #tpu.memory_space<vmem>>, vector<8x32xf32>,
    return
  }
}

</mosaic_0001>

<llo_original>
// kernel: tpu_custom_call.1
$region0: #{tpu_custom_call.1}
  #allocation0 [shape = 'u32[]', space=smem, size = 0x4, offset = 0x4, fixed_abs, tag = 'smem constant byte address 0x4 - core index']
  #allocation1 [shape = 'u32[144,128]{1,0:T(1,128)}', space=vmem, size = 0x12000, scoped, tag = 'internal scratch']
  %s0 = inlined_call_operand.hbm [shape: f32[8,32], index: 0, kind: input, shape index: {}]
  %s1 = inlined_call_operand.hbm [shape: bf16[32,128], index: 1, kind: input, shape index: {}]
  %s2 = inlined_call_operand.vmem [shape: f32[1,128], index: 2, kind: input, shape index: {}]
  %s3 = inlined_call_operand.hbm [shape: bf16[128,128], index: 3, kind: input, shape index: {}]
  %s4 = inlined_call_operand.vmem [shape: f32[1,128], index: 4, kind: input, shape index: {}]
  %s5 = inlined_call_operand.vmem [shape: f32[1,128], index: 5, kind: input, shape index: {}]
  %s6 = inlined_call_operand.vmem [shape: f32[1,128], index: 6, kind: input, shape index: {}]
  %s7 = inlined_call_operand.hbm [shape: f32[8,32], index: 7, kind: output, shape index: {}]
  %s8 = sld [smem:[#allocation0]]
  $region50: #{tpu_custom_call.1} parent=0
    _
  %s10 = ssub.s32 1, %s8
  %s11 = scalar_select 0, %s10, %s8
  $region1: #{tpu_custom_call.1} parent=0
    #allocation2 [shape = 'u8[4096]{0}', space=vmem, size = 0x1000, scoped, tag = 'input window, operand 0, single buffered']
    #allocation3 [shape = 's32[1]{0}', space=sflag, size = 0x4, scoped, tag = 'scoped memory for tpu_custom_call.1']
    #allocation4 [shape = 's32[1]{0}', space=sflag, size = 0x4, scoped, tag = 'scoped memory for tpu_custom_call.1']
    #allocation5 [shape = 'u8[8192]{0}', space=vmem, size = 0x2000, scoped, tag = 'input window, operand 1, single buffered']
    #allocation6 [shape = 's32[1]{0}', space=sflag, size = 0x4, scoped, tag = 'scoped memory for tpu_custom_call.1']
    #allocation7 [shape = 'u8[32768]{0}', space=vmem, size = 0x8000, scoped, tag = 'input window, operand 3, single buffered']
    #allocation8 [shape = 'u8[4096]{0}', space=vmem, size = 0x1000, scoped, tag = 'output window, operand 0, single buffered']
    %12 = vsyncpa [#allocation3], 0
    %13 = vsyncpa [#allocation6], 0
    %14 = vsyncpa [#allocation4], 0
    // Predicated region
    $region2: #{tpu_custom_call.1} parent=1 // pred_check
      _
    $region3: #{tpu_custom_call.1} parent=1 // pred_check_branch
      %16 = sbr.rel (0) target = $region5
    $region4: #{tpu_custom_call.1} parent=1 // pred_region
      %s18 = ssub.s32 128, 128
      %19 = vsyncadd [#allocation3], %s18
      %s21 = sshll.u32 [#allocation2], 4
      %s22 = int_to_ptr.vmem [resolvable:$true] %s21
      %24 = dma.hbm_to_vmem [thread:$0]  %s0, 128, %s22, [#allocation3]
    $region5: #{tpu_custom_call.1} parent=1 // pred_fallthru
      _
    // Predicated region
    $region6: #{tpu_custom_call.1} parent=1 // pred_check
      _
    $region7: #{tpu_custom_call.1} parent=1 // pred_check_branch
      %26 = sbr.rel (0) target = $region9
    $region8: #{tpu_custom_call.1} parent=1 // pred_region
      %s28 = ssub.s32 256, 256
      %29 = vsyncadd [#allocation6], %s28
      %s30 = sshll.u32 [#allocation5], 4
      %s31 = int_to_ptr.vmem [resolvable:$true] %s30
      %36 = dma.hbm_to_vmem [thread:$0]  %s1, 256, %s31, [#allocation6], 64, 64, 4
    $region9: #{tpu_custom_call.1} parent=1 // pred_fallthru
      _
    // Predicated region
    $region10: #{tpu_custom_call.1} parent=1 // pred_check
      _
    $region11: #{tpu_custom_call.1} parent=1 // pred_check_branch
      %38 = sbr.rel (0) target = $region13
    $region12: #{tpu_custom_call.1} parent=1 // pred_region
      _
    $region13: #{tpu_custom_call.1} parent=1 // pred_fallthru
      _
    // Predicated region
    $region14: #{tpu_custom_call.1} parent=1 // pred_check
      _
    $region15: #{tpu_custom_call.1} parent=1 // pred_check_branch
      %40 = sbr.rel (0) target = $region17
    $region16: #{tpu_custom_call.1} parent=1 // pred_region
      %s42 = ssub.s32 1024, 1024
      %43 = vsyncadd [#allocation6], %s42
      %s44 = sshll.u32 [#allocation7], 4
      %s45 = int_to_ptr.vmem [resolvable:$true] %s44
      %50 = dma.hbm_to_vmem [thread:$0]  %s3, 1024, %s45, [#allocation6], 64, 64, 4
    $region17: #{tpu_custom_call.1} parent=1 // pred_fallthru
      _
    // Predicated region
    $region18: #{tpu_custom_call.1} parent=1 // pred_check
      _
    $region19: #{tpu_custom_call.1} parent=1 // pred_check_branch
      %52 = sbr.rel (0) target = $region21
    $region20: #{tpu_custom_call.1} parent=1 // pred_region
      _
    $region21: #{tpu_custom_call.1} parent=1 // pred_fallthru
      _
    // Predicated region
    $region22: #{tpu_custom_call.1} parent=1 // pred_check
      _
    $region23: #{tpu_custom_call.1} parent=1 // pred_check_branch
      %54 = sbr.rel (0) target = $region25
    $region24: #{tpu_custom_call.1} parent=1 // pred_region
      _
    $region25: #{tpu_custom_call.1} parent=1 // pred_fallthru
      _
    // Predicated region
    $region26: #{tpu_custom_call.1} parent=1 // pred_check
      _
    $region27: #{tpu_custom_call.1} parent=1 // pred_check_branch
      %56 = sbr.rel (0) target = $region29
    $region28: #{tpu_custom_call.1} parent=1 // pred_region
      _
    $region29: #{tpu_custom_call.1} parent=1 // pred_fallthru
      _
    // Predicated region
    $region30: #{tpu_custom_call.1} parent=1 // pred_check
      _
    $region31: #{tpu_custom_call.1} parent=1 // pred_check_branch
      %58 = sbr.rel (0) target = $region33
    $region32: #{tpu_custom_call.1} parent=1 // pred_region
      %59 = dma.done [#allocation3], 128
    $region33: #{tpu_custom_call.1} parent=1 // pred_fallthru
      _
    // Predicated region
    $region34: #{tpu_custom_call.1} parent=1 // pred_check
      _
    $region35: #{tpu_custom_call.1} parent=1 // pred_check_branch
      %61 = sbr.rel (0) target = $region37
    $region36: #{tpu_custom_call.1} parent=1 // pred_region
      %62 = dma.done [#allocation6], 256
    $region37: #{tpu_custom_call.1} parent=1 // pred_fallthru
      _
    // Predicated region
    $region38: #{tpu_custom_call.1} parent=1 // pred_check
      _
    $region39: #{tpu_custom_call.1} parent=1 // pred_check_branch
      %64 = sbr.rel (0) target = $region41
    $region40: #{tpu_custom_call.1} parent=1 // pred_region
      %65 = dma.done [#allocation6], 1024
    $region41: #{tpu_custom_call.1} parent=1 // pred_fallthru
      _
    %v67 = vld [vmem:[#allocation2] sm:$0xff]
    %v68 = vpack.c.bf16 %v67, %v67
    %v69 = vld [vmem:[#allocation5] sm:$0xf]
    %v70 = vld [vmem:[#allocation5 + $0x4] sm:$0xf]
    %v71 = vld [vmem:[#allocation5 + $0x8] sm:$0xf]
    %v72 = vld [vmem:[#allocation5 + $0xc] sm:$0xf]
    %v73 = vld [vmem:[%s2] sm:$0x1]
    %v75 = vlaneseq
    %v76 = vshrl.u32 %v75, 7
    %v77 = vsub.s32 0, %v76
    %v78 = vrot.slane %v73, %v77
    %v84 = vunpack.c.l.b16 %v69
    %v85 = vunpack.c.l.b16 %v70
    %v86 = vunpack.c.l.b16 %v71
    %v87 = vunpack.c.l.b16 %v72
    %v88 = vpack.c.b16 %v85, %v84
    %v89 = vpack.c.b16 %v87, %v86
    %vm92 = vcmask 261120
    %v94 = vsel %vm92, %v68, 0
    %96 = vmatprep.subr.bf16.mxu0 0
    %97 = vmatpush1.bf16.msra.mxu0 %v88
    %98 = vmatprep.subr.bf16.mxu0 0
    %99 = vmatpush1.bf16.msra.mxu0 %v89
    %100 = vmatprep.subr.bf16.mxu0 0
    %101 = vmatpush1.bf16.msra.mxu0 0
    %102 = vmatprep.subr.bf16.mxu0 0
    %103 = vmatpush1.bf16.msra.mxu0 0
    %104 = vmatprep.subr.bf16.mxu0 0
    %105 = vmatpush1.bf16.msra.mxu0 0
    %106 = vmatprep.subr.bf16.mxu0 0
    %107 = vmatpush1.bf16.msra.mxu0 0
    %108 = vmatprep.subr.bf16.mxu0 0
    %109 = vmatpush1.bf16.msra.mxu0 0
    %110 = vmatprep.subr.bf16.mxu0 0
    %111 = vmatpush1.bf16.msra.mxu0 0
    %112 = vmatprep.subr.bf16.mxu0 0
    %113 = vmatpush1.bf16.msra.mxu0 0
    %114 = vmatprep.subr.bf16.mxu0 0
    %115 = vmatpush1.bf16.msra.mxu0 0
    %116 = vmatprep.subr.bf16.mxu0 0
    %117 = vmatpush1.bf16.msra.mxu0 0
    %118 = vmatprep.subr.bf16.mxu0 0
    %119 = vmatpush1.bf16.msra.mxu0 0
    %120 = vmatprep.subr.bf16.mxu0 0
    %121 = vmatpush1.bf16.msra.mxu0 0
    %122 = vmatprep.subr.bf16.mxu0 0
    %123 = vmatpush1.bf16.msra.mxu0 0
    %124 = vmatprep.subr.bf16.mxu0 0
    %125 = vmatpush1.bf16.msra.mxu0 0
    %126 = vmatprep.subr.bf16.mxu0 0
    %127 = vmatpush1.bf16.msra.mxu0 0
    %128 = vmatprep.mubr.bf16.mxu0 0
    %129 = vmatmul.mubr.bf16.gmra.mrb[0].mxu0 %v94
    %v130 = vpop.f32.mrb[0].mxu0
    %v131 = vadd.f32 %v78, %v130
    %v132 = vpop.f32.mrb[0].mxu0
    %v133 = vpop.f32.mrb[0].mxu0
    %v134 = vpop.f32.mrb[0].mxu0
    %135 = vdwg.mxu0
    %vm136 = vcmp.gt.f32.partialorder %v131, 0.0
    %v137 = vmul.f32 %v131, 0.01
    %v138 = vsel %vm136, %v131, %v137
    %v139 = vpack.c.bf16 %v138, %v138
    %v140 = vld [vmem:[#allocation7] sm:$0xf]
    %v141 = vld [vmem:[#allocation7 + $0x4] sm:$0xf]
    %v142 = vld [vmem:[#allocation7 + $0x8] sm:$0xf]
    %v143 = vld [vmem:[#allocation7 + $0xc] sm:$0xf]
    %v144 = vld [vmem:[#allocation7 + $0x10] sm:$0xf]
    %v145 = vld [vmem:[#allocation7 + $0x14] sm:$0xf]
    %v146 = vld [vmem:[#allocation7 + $0x18] sm:$0xf]
    %v147 = vld [vmem:[#allocation7 + $0x1c] sm:$0xf]
    %v148 = vld [vmem:[#allocation7 + $0x20] sm:$0xf]
    %v149 = vld [vmem:[#allocation7 + $0x24] sm:$0xf]
    %v150 = vld [vmem:[#allocation7 + $0x28] sm:$0xf]
    %v151 = vld [vmem:[#allocation7 + $0x2c] sm:$0xf]
    %v152 = vld [vmem:[#allocation7 + $0x30] sm:$0xf]
    %v153 = vld [vmem:[#allocation7 + $0x34] sm:$0xf]
    %v154 = vld [vmem:[#allocation7 + $0x38] sm:$0xf]
    %v155 = vld [vmem:[#allocation7 + $0x3c] sm:$0xf]
    %v156 = vld [vmem:[%s4] sm:$0x1]
    %v158 = vlaneseq
    %v159 = vshrl.u32 %v158, 7
    %v160 = vsub.s32 0, %v159
    %v161 = vrot.slane %v156, %v160
    %v179 = vunpack.c.l.b16 %v140
    %v180 = vunpack.c.l.b16 %v141
    %v181 = vunpack.c.l.b16 %v142
    %v182 = vunpack.c.l.b16 %v143
    %v183 = vunpack.c.l.b16 %v144
    %v184 = vunpack.c.l.b16 %v145
    %v185 = vunpack.c.l.b16 %v146
    %v186 = vunpack.c.l.b16 %v147
    %v187 = vunpack.c.l.b16 %v148
    %v188 = vunpack.c.l.b16 %v149
    %v189 = vunpack.c.l.b16 %v150
    %v190 = vunpack.c.l.b16 %v151
    %v191 = vunpack.c.l.b16 %v152
    %v192 = vunpack.c.l.b16 %v153
    %v193 = vunpack.c.l.b16 %v154
    %v194 = vunpack.c.l.b16 %v155
    %v195 = vpack.c.b16 %v180, %v179
    %v196 = vpack.c.b16 %v182, %v181
    %v197 = vpack.c.b16 %v184, %v183
    %v198 = vpack.c.b16 %v186, %v185
    %v199 = vpack.c.b16 %v188, %v187
    %v200 = vpack.c.b16 %v190, %v189
    %v201 = vpack.c.b16 %v192, %v191
    %v202 = vpack.c.b16 %v194, %v193
    %211 = vmatprep.subr.bf16.mxu0 0
    %212 = vmatpush1.bf16.msra.mxu0 %v195
    %213 = vmatprep.subr.bf16.mxu0 0
    %214 = vmatpush1.bf16.msra.mxu0 %v196
    %215 = vmatprep.subr.bf16.mxu0 0
    %216 = vmatpush1.bf16.msra.mxu0 %v197
    %217 = vmatprep.subr.bf16.mxu0 0
    %218 = vmatpush1.bf16.msra.mxu0 %v198
    %219 = vmatprep.subr.bf16.mxu0 0
    %220 = vmatpush1.bf16.msra.mxu0 %v199
    %221 = vmatprep.subr.bf16.mxu0 0
    %222 = vmatpush1.bf16.msra.mxu0 %v200
    %223 = vmatprep.subr.bf16.mxu0 0
    %224 = vmatpush1.bf16.msra.mxu0 %v201
    %225 = vmatprep.subr.bf16.mxu0 0
    %226 = vmatpush1.bf16.msra.mxu0 %v202
    %227 = vmatprep.subr.bf16.mxu0 0
    %228 = vmatpush1.bf16.msra.mxu0 0
    %229 = vmatprep.subr.bf16.mxu0 0
    %230 = vmatpush1.bf16.msra.mxu0 0
    %231 = vmatprep.subr.bf16.mxu0 0
    %232 = vmatpush1.bf16.msra.mxu0 0
    %233 = vmatprep.subr.bf16.mxu0 0
    %234 = vmatpush1.bf16.msra.mxu0 0
    %235 = vmatprep.subr.bf16.mxu0 0
    %236 = vmatpush1.bf16.msra.mxu0 0
    %237 = vmatprep.subr.bf16.mxu0 0
    %238 = vmatpush1.bf16.msra.mxu0 0
    %239 = vmatprep.subr.bf16.mxu0 0
    %240 = vmatpush1.bf16.msra.mxu0 0
    %241 = vmatprep.subr.bf16.mxu0 0
    %242 = vmatpush1.bf16.msra.mxu0 0
    %243 = vmatprep.mubr.bf16.mxu0 0
    %244 = vmatmul.mubr.bf16.gmra.mrb[0].mxu0 %v139
    %v245 = vpop.f32.mrb[0].mxu0
    %v246 = vadd.f32 %v161, %v245
    %v247 = vpop.f32.mrb[0].mxu0
    %v248 = vpop.f32.mrb[0].mxu0
    %v249 = vpop.f32.mrb[0].mxu0
    %250 = vdwg.mxu0
    %vm251 = vcmp.gt.f32.partialorder %v246, 0.0
    %v252 = vmul.f32 %v246, 0.01
    %v253 = vsel %vm251, %v246, %v252
    %v254 = vrot.slane %v253, 4
    %v255 = vadd.f32 %v253, %v254
    %v256 = vrot.slane %v255, 2
    %v257 = vadd.f32 %v255, %v256
    %v258 = vrot.slane %v257, 1
    %v259 = vadd.f32 %v257, %v258
    %v260 = vmul.f32 %v259, 0.125
    %v261 = vmul.f32 %v253, %v253
    %v262 = vrot.slane %v261, 4
    %v263 = vadd.f32 %v261, %v262
    %v264 = vrot.slane %v263, 2
    %v265 = vadd.f32 %v263, %v264
    %v266 = vrot.slane %v265, 1
    %v267 = vadd.f32 %v265, %v266
    %v268 = vmul.f32 %v267, 0.125
    %v269 = vmul.f32 %v260, %v260
    %v270 = vsub.f32 %v268, %v269
    %v271 = vmax.f32 %v270, 0.0
    %v272 = vld [vmem:[%s5] sm:$0x1]
    %v273 = vadd.f32 %v271, 1e-05
    %v274 = vrsqrt.pop %v273
    %v275 = vmul.f32 %v272, %v274
    %v276 = vsub.f32 %v253, %v260
    %v278 = vlaneseq
    %v279 = vshrl.u32 %v278, 7
    %v280 = vsub.s32 0, %v279
    %v281 = vrot.slane %v275, %v280
    %v283 = vmul.f32 %v276, %v281
    %v284 = vld [vmem:[%s6] sm:$0x1]
    %v286 = vlaneseq
    %v287 = vshrl.u32 %v286, 7
    %v288 = vsub.s32 0, %v287
    %v289 = vrot.slane %v284, %v288
    %v291 = vadd.f32 %v283, %v289
    %292 = vst.msk [vmem:[#allocation8] sm:$0xff] %vm92, %v291
    // Predicated region
    $region42: #{tpu_custom_call.1} parent=1 // pred_check
      _
    $region43: #{tpu_custom_call.1} parent=1 // pred_check_branch
      %294 = sbr.rel (0) target = $region45
    $region44: #{tpu_custom_call.1} parent=1 // pred_region
      %s296 = ssub.s32 128, 128
      %297 = vsyncadd [#allocation4], %s296
      %s299 = sshll.u32 [#allocation8], 4
      %s300 = int_to_ptr.vmem [resolvable:$true] %s299
      %302 = dma.vmem_to_hbm [thread:$0]  %s300, 128, %s7, [#allocation4]
    $region45: #{tpu_custom_call.1} parent=1 // pred_fallthru
      _
    // Predicated region
    $region46: #{tpu_custom_call.1} parent=1 // pred_check
      _
    $region47: #{tpu_custom_call.1} parent=1 // pred_check_branch
      %304 = sbr.rel (0) target = $region49
    $region48: #{tpu_custom_call.1} parent=1 // pred_region
      %305 = dma.done [#allocation4], 128
    $region49: #{tpu_custom_call.1} parent=1 // pred_fallthru
      _
    %306 = vsyncpa [#allocation3], 1
    %307 = vsyncpa [#allocation6], 1
    %308 = vsyncpa [#allocation4], 1

</llo_original>
